<compile_context>
chip_gen: v7x
topology: tpu7x:2x2x1
jax: 0.10.0
libtpu: 0.0.40
codegen_flags: <defaults>
</compile_context>

<pallas_src>
import math
import jax
import jax.numpy as jnp
from jax import lax
from jax.experimental import pallas as pl
from jax.experimental.pallas import tpu as pltpu

LEAKY_SLOPE = 0.01
BN_EPS = 1e-5


def _leaky_relu(x):
    return jnp.where(x >= 0, x, LEAKY_SLOPE * x)


def policy_kernel(x_ref,
                  w1_ref, b1_ref,
                  w2_ref, b2_ref,
                  rw1_ref, rb1_ref, rw2_ref, rb2_ref,
                  qkvw_ref, qkvb_ref,
                  hw_ref, hb_ref,
                  o_ref):
    x = x_ref[...]

    def linear(h, w_ref, b_ref):
        return jnp.dot(h, w_ref[...], preferred_element_type=jnp.float32) + b_ref[...]

    # --- hidden MLP layers (BN eval-mode already folded into W/b) ---
    h = _leaky_relu(linear(x, w1_ref, b1_ref))
    h = _leaky_relu(linear(h, w2_ref, b2_ref))

    # --- residual block ---
    r = _leaky_relu(linear(h, rw1_ref, rb1_ref))
    r = linear(r, rw2_ref, rb2_ref)
    h = _leaky_relu(r + h)

    # --- attention over the batch axis, fused QKV projection (single MXU pass) ---
    d = h.shape[-1]
    qkv = linear(h, qkvw_ref, qkvb_ref)          # (B, 3d)
    q = qkv[:, :d]
    k = qkv[:, d:2 * d]
    v = qkv[:, 2 * d:]

    inv_sqrt_d = 1.0 / math.sqrt(d)
    # contract last axes of q and k directly -> no explicit transpose of k
    scores = lax.dot_general(q, k, (((1,), (1,)), ((), ())),
                             preferred_element_type=jnp.float32) * inv_sqrt_d
    m = jnp.max(scores, axis=-1, keepdims=True)
    e = jnp.exp(scores - m)
    attn = e * pl.reciprocal(jnp.sum(e, axis=-1, keepdims=True), approx=True)
    h = jnp.dot(attn, v, preferred_element_type=jnp.float32)

    # --- discrete action head + softmax (lane-padded to 128; pad bias = -1e30 -> prob ~0) ---
    logits = linear(h, hw_ref, hb_ref)
    m2 = jnp.max(logits, axis=-1, keepdims=True)
    e2 = jnp.exp(logits - m2)
    o_ref[...] = e2 / jnp.sum(e2, axis=-1, keepdims=True)   # exact divide for head accuracy


def kaiming_linear(key, fan_in, fan_out):
    """Kaiming-normal (leaky_relu gain, fan_in mode), returned already transposed to (in, out)."""
    gain = math.sqrt(2.0 / (1.0 + LEAKY_SLOPE ** 2))
    std = gain / math.sqrt(fan_in)
    w = std * jax.random.normal(key, (fan_in, fan_out), jnp.float32)
    b = jnp.zeros((1, fan_out), jnp.float32)
    return w, b


def make_params(key, state_dim, action_dim, hidden_sizes):
    keys = jax.random.split(key, 8)
    h1, h2 = hidden_sizes
    p = {}

    # BatchNorm1d eval-mode fold (gamma=1, beta=0, running_mean=0, running_var=1):
    #   y = x / sqrt(1 + eps)  =>  W' = W * s, b' = b * s (+ shift, which is 0 here)
    bn_scale = 1.0 / math.sqrt(1.0 + BN_EPS)
    w1, b1 = kaiming_linear(keys[0], state_dim, h1)
    p["w1"], p["b1"] = w1 * bn_scale, b1 * bn_scale
    w2, b2 = kaiming_linear(keys[1], h1, h2)
    p["w2"], p["b2"] = w2 * bn_scale, b2 * bn_scale

    # residual block (in = out = h2)
    p["rw1"], p["rb1"] = kaiming_linear(keys[2], h2, h2)
    p["rw2"], p["rb2"] = kaiming_linear(keys[3], h2, h2)

    # attention Q/K/V fused into a single (h2, 3*h2) projection
    qw, qb = kaiming_linear(keys[4], h2, h2)
    kw, kb = kaiming_linear(keys[5], h2, h2)
    vw, vb = kaiming_linear(keys[6], h2, h2)
    p["qkvw"] = jnp.concatenate([qw, kw, vw], axis=1)
    p["qkvb"] = jnp.concatenate([qb, kb, vb], axis=1)

    # action head, lane-padded to a multiple of 128:
    #   pad weight columns = 0, pad bias = -1e30 so padded logits vanish under softmax
    hw, hb = kaiming_linear(keys[7], h2, action_dim)
    a_pad = ((action_dim + 127) // 128) * 128
    p["hw"] = jnp.pad(hw, ((0, 0), (0, a_pad - action_dim)))
    p["hb"] = jnp.concatenate(
        [hb, jnp.full((1, a_pad - action_dim), -1e30, jnp.float32)], axis=1)
    return p


def policy_forward(x, p, action_dim):
    B = x.shape[0]
    a_pad = p["hw"].shape[1]
    args = (x,
            p["w1"], p["b1"], p["w2"], p["b2"],
            p["rw1"], p["rb1"], p["rw2"], p["rb2"],
            p["qkvw"], p["qkvb"],
            p["hw"], p["hb"])
    vmem = pl.BlockSpec(memory_space=pltpu.MemorySpace.VMEM)
    probs_padded = pl.pallas_call(
        policy_kernel,
        out_shape=jax.ShapeDtypeStruct((B, a_pad), jnp.float32),
        in_specs=[vmem] * len(args),
        out_specs=vmem,
    )(*args)
    # drop the padded lanes (their probabilities are ~0 and excluded from normalization
    # only via the -1e30 bias trick; real lanes carry the exact softmax over A logits)
    return probs_padded[:, :action_dim]


def policy_forward_ref(x, p, action_dim):
    """Pure-JAX reference (un-fused ops) for validation."""
    def lin(h, w, b):
        return h @ w + b
    h = _leaky_relu(lin(x, p["w1"], p["b1"]))
    h = _leaky_relu(lin(h, p["w2"], p["b2"]))
    r = lin(_leaky_relu(lin(h, p["rw1"], p["rb1"])), p["rw2"], p["rb2"])
    h = _leaky_relu(r + h)
    d = h.shape[-1]
    q = lin(h, p["qkvw"][:, :d], p["qkvb"][:, :d])
    k = lin(h, p["qkvw"][:, d:2 * d], p["qkvb"][:, d:2 * d])
    v = lin(h, p["qkvw"][:, 2 * d:], p["qkvb"][:, 2 * d:])
    attn = jax.nn.softmax(q @ k.T / math.sqrt(d), axis=-1)
    h = attn @ v
    logits = lin(h, p["hw"][:, :action_dim], p["hb"][:, :action_dim])
    return jax.nn.softmax(logits, axis=-1)


if __name__ == "__main__":
    batch, state_dim, action_dim = 8, 16, 4
    hidden_sizes = [128, 128]          # module default -> natively lane-dense hidden dims

    key = jax.random.PRNGKey(0)
    kx, kp = jax.random.split(key)
    x = jax.random.normal(kx, (batch, state_dim), jnp.float32)
    params = make_params(kp, state_dim, action_dim, hidden_sizes)

    out = jax.block_until_ready(policy_forward(x, params, action_dim))
    ref = policy_forward_ref(x, params, action_dim)

    assert out.shape == (batch, action_dim)
    # pl.reciprocal(approx=True) in the attention softmax perturbs results slightly -> 1e-3 tol
    assert jnp.allclose(jnp.sum(out, axis=-1), 1.0, atol=1e-3)
    assert jnp.allclose(out, ref, atol=1e-3, rtol=1e-2)
    print("KERNEL_OK")
</pallas_src>

<mosaic_0001>
module attributes {stable_mosaic.version = 11 : i64} {
  func.func @policy_kernel(%arg0: memref<8x16xf32, #tpu.memory_space<vmem>>, %arg1: memref<16x128xf32, #tpu.memory_space<vmem>>, %arg2: memref<1x128xf32, #tpu.memory_space<vmem>>, %arg3: memref<128x128xf32, #tpu.memory_space<vmem>>, %arg4: memref<1x128xf32, #tpu.memory_space<vmem>>, %arg5: memref<128x128xf32, #tpu.memory_space<vmem>>, %arg6: memref<1x128xf32, #tpu.memory_space<vmem>>, %arg7: memref<128x128xf32, #tpu.memory_space<vmem>>, %arg8: memref<1x128xf32, #tpu.memory_space<vmem>>, %arg9: memref<128x384xf32, #tpu.memory_space<vmem>>, %arg10: memref<1x384xf32, #tpu.memory_space<vmem>>, %arg11: memref<128x128xf32, #tpu.memory_space<vmem>>, %arg12: memref<1x128xf32, #tpu.memory_space<vmem>>, %arg13: memref<8x128xf32, #tpu.memory_space<vmem>>) attributes {dimension_semantics = [], scalar_prefetch = 0 : i64, scratch_operands = 0 : i64, tpu.core_type = #tpu.core_type<tc>} {
    %c0 = arith.constant 0 : index
    %c0_0 = arith.constant 0 : index
    %0 = vector.load %arg0[%c0, %c0_0] : memref<8x16xf32, #tpu.memory_space<vmem>>, vector<8x16xf32>
    %c0_1 = arith.constant 0 : index
    %c0_2 = arith.constant 0 : index
    %1 = vector.load %arg1[%c0_1, %c0_2] : memref<16x128xf32, #tpu.memory_space<vmem>>, vector<16x128xf32>
    %cst = arith.constant dense<0.000000e+00> : vector<8x128xf32>
    %2 = tpu.matmul %0, %1, %cst {dimension_numbers = #tpu.dot_dimension_numbers<[1], [0], [0], [1], [0, 0, 1, 1], [], []>} : vector<8x16xf32>, vector<16x128xf32>, vector<8x128xf32> -> vector<8x128xf32>
    %c0_3 = arith.constant 0 : index
    %c0_4 = arith.constant 0 : index
    %3 = vector.load %arg2[%c0_3, %c0_4] : memref<1x128xf32, #tpu.memory_space<vmem>>, vector<1x128xf32>
    %4 = vector.broadcast %3 : vector<1x128xf32> to vector<8x128xf32>
    %5 = arith.addf %2, %4 : vector<8x128xf32>
    %cst_5 = arith.constant 0.000000e+00 : f32
    %6 = vector.broadcast %cst_5 : f32 to vector<8x128xf32>
    %7 = arith.cmpf oge, %5, %6 : vector<8x128xf32>
    %cst_6 = arith.constant 0.00999999977 : f32
    %8 = vector.broadcast %cst_6 : f32 to vector<8x128xf32>
    %9 = arith.mulf %8, %5 : vector<8x128xf32>
    %10 = arith.select %7, %5, %9 : vector<8x128xi1>, vector<8x128xf32>
    %c0_7 = arith.constant 0 : index
    %c0_8 = arith.constant 0 : index
    %11 = vector.load %arg3[%c0_7, %c0_8] : memref<128x128xf32, #tpu.memory_space<vmem>>, vector<128x128xf32>
    %cst_9 = arith.constant dense<0.000000e+00> : vector<8x128xf32>
    %12 = tpu.matmul %10, %11, %cst_9 {dimension_numbers = #tpu.dot_dimension_numbers<[1], [0], [0], [1], [0, 0, 1, 1], [], []>} : vector<8x128xf32>, vector<128x128xf32>, vector<8x128xf32> -> vector<8x128xf32>
    %c0_10 = arith.constant 0 : index
    %c0_11 = arith.constant 0 : index
    %13 = vector.load %arg4[%c0_10, %c0_11] : memref<1x128xf32, #tpu.memory_space<vmem>>, vector<1x128xf32>
    %14 = vector.broadcast %13 : vector<1x128xf32> to vector<8x128xf32>
    %15 = arith.addf %12, %14 : vector<8x128xf32>
    %cst_12 = arith.constant 0.000000e+00 : f32
    %16 = vector.broadcast %cst_12 : f32 to vector<8x128xf32>
    %17 = arith.cmpf oge, %15, %16 : vector<8x128xf32>
    %cst_13 = arith.constant 0.00999999977 : f32
    %18 = vector.broadcast %cst_13 : f32 to vector<8x128xf32>
    %19 = arith.mulf %18, %15 : vector<8x128xf32>
    %20 = arith.select %17, %15, %19 : vector<8x128xi1>, vector<8x128xf32>
    %c0_14 = arith.constant 0 : index
    %c0_15 = arith.constant 0 : index
    %21 = vector.load %arg5[%c0_14, %c0_15] : memref<128x128xf32, #tpu.memory_space<vmem>>, vector<128x128xf32>
    %cst_16 = arith.constant dense<0.000000e+00> : vector<8x128xf32>
    %22 = tpu.matmul %20, %21, %cst_16 {dimension_numbers = #tpu.dot_dimension_numbers<[1], [0], [0], [1], [0, 0, 1, 1], [], []>} : vector<8x128xf32>, vector<128x128xf32>, vector<8x128xf32> -> vector<8x128xf32>
    %c0_17 = arith.constant 0 : index
    %c0_18 = arith.constant 0 : index
    %23 = vector.load %arg6[%c0_17, %c0_18] : memref<1x128xf32, #tpu.memory_space<vmem>>, vector<1x128xf32>
    %24 = vector.broadcast %23 : vector<1x128xf32> to vector<8x128xf32>
    %25 = arith.addf %22, %24 : vector<8x128xf32>
    %cst_19 = arith.constant 0.000000e+00 : f32
    %26 = vector.broadcast %cst_19 : f32 to vector<8x128xf32>
    %27 = arith.cmpf oge, %25, %26 : vector<8x128xf32>
    %cst_20 = arith.constant 0.00999999977 : f32
    %28 = vector.broadcast %cst_20 : f32 to vector<8x128xf32>
    %29 = arith.mulf %28, %25 : vector<8x128xf32>
    %30 = arith.select %27, %25, %29 : vector<8x128xi1>, vector<8x128xf32>
    %c0_21 = arith.constant 0 : index
    %c0_22 = arith.constant 0 : index
    %31 = vector.load %arg7[%c0_21, %c0_22] : memref<128x128xf32, #tpu.memory_space<vmem>>, vector<128x128xf32>
    %cst_23 = arith.constant dense<0.000000e+00> : vector<8x128xf32>
    %32 = tpu.matmul %30, %31, %cst_23 {dimension_numbers = #tpu.dot_dimension_numbers<[1], [0], [0], [1], [0, 0, 1, 1], [], []>} : vector<8x128xf32>, vector<128x128xf32>, vector<8x128xf32> -> vector<8x128xf32>
    %c0_24 = arith.constant 0 : index
    %c0_25 = arith.constant 0 : index
    %33 = vector.load %arg8[%c0_24, %c0_25] : memref<1x128xf32, #tpu.memory_space<vmem>>, vector<1x128xf32>
    %34 = vector.broadcast %33 : vector<1x128xf32> to vector<8x128xf32>
    %35 = arith.addf %32, %34 : vector<8x128xf32>
    %36 = arith.addf %35, %20 : vector<8x128xf32>
    %cst_26 = arith.constant 0.000000e+00 : f32
    %37 = vector.broadcast %cst_26 : f32 to vector<8x128xf32>
    %38 = arith.cmpf oge, %36, %37 : vector<8x128xf32>
    %cst_27 = arith.constant 0.00999999977 : f32
    %39 = vector.broadcast %cst_27 : f32 to vector<8x128xf32>
    %40 = arith.mulf %39, %36 : vector<8x128xf32>
    %41 = arith.select %38, %36, %40 : vector<8x128xi1>, vector<8x128xf32>
    %c0_28 = arith.constant 0 : index
    %c0_29 = arith.constant 0 : index
    %42 = vector.load %arg9[%c0_28, %c0_29] : memref<128x384xf32, #tpu.memory_space<vmem>>, vector<128x384xf32>
    %cst_30 = arith.constant dense<0.000000e+00> : vector<8x384xf32>
    %43 = tpu.matmul %41, %42, %cst_30 {dimension_numbers = #tpu.dot_dimension_numbers<[1], [0], [0], [1], [0, 0, 1, 1], [], []>} : vector<8x128xf32>, vector<128x384xf32>, vector<8x384xf32> -> vector<8x384xf32>
    %c0_31 = arith.constant 0 : index
    %c0_32 = arith.constant 0 : index
    %44 = vector.load %arg10[%c0_31, %c0_32] : memref<1x384xf32, #tpu.memory_space<vmem>>, vector<1x384xf32>
    %45 = vector.broadcast %44 : vector<1x384xf32> to vector<8x384xf32>
    %46 = arith.addf %43, %45 : vector<8x384xf32>
    %47 = vector.extract_strided_slice %46 {offsets = [0, 0], sizes = [8, 128], strides = [1, 1]} : vector<8x384xf32> to vector<8x128xf32>
    %48 = vector.extract_strided_slice %46 {offsets = [0, 128], sizes = [8, 128], strides = [1, 1]} : vector<8x384xf32> to vector<8x128xf32>
    %49 = vector.extract_strided_slice %46 {offsets = [0, 256], sizes = [8, 128], strides = [1, 1]} : vector<8x384xf32> to vector<8x128xf32>
    %cst_33 = arith.constant dense<0.000000e+00> : vector<8x8xf32>
    %50 = tpu.matmul %47, %48, %cst_33 {dimension_numbers = #tpu.dot_dimension_numbers<[1], [1], [0], [0], [0, 0, 1, 0], [], []>} : vector<8x128xf32>, vector<8x128xf32>, vector<8x8xf32> -> vector<8x8xf32>
    %cst_34 = arith.constant 0.0883883461 : f32
    %51 = vector.broadcast %cst_34 : f32 to vector<8x8xf32>
    %52 = arith.mulf %50, %51 : vector<8x8xf32>
    %cst_35 = arith.constant dense<0xFF800000> : vector<8xf32>
    %53 = vector.multi_reduction <maximumf>, %52, %cst_35 [1] : vector<8x8xf32> to vector<8xf32>
    %54 = vector.shape_cast %53 : vector<8xf32> to vector<8x1xf32>
    %55 = vector.broadcast %54 : vector<8x1xf32> to vector<8x8xf32>
    %56 = arith.subf %52, %55 : vector<8x8xf32>
    %57 = math.exp %56 : vector<8x8xf32>
    %cst_36 = arith.constant dense<0.000000e+00> : vector<8xf32>
    %58 = vector.multi_reduction <add>, %57, %cst_36 [1] : vector<8x8xf32> to vector<8xf32>
    %59 = vector.shape_cast %58 : vector<8xf32> to vector<8x1xf32>
    %60 = tpu.reciprocal %59 {approx = true} : vector<8x1xf32> -> vector<8x1xf32>
    %61 = vector.broadcast %60 : vector<8x1xf32> to vector<8x8xf32>
    %62 = arith.mulf %57, %61 : vector<8x8xf32>
    %cst_37 = arith.constant dense<0.000000e+00> : vector<8x128xf32>
    %63 = tpu.matmul %62, %49, %cst_37 {dimension_numbers = #tpu.dot_dimension_numbers<[1], [0], [0], [1], [0, 0, 1, 1], [], []>} : vector<8x8xf32>, vector<8x128xf32>, vector<8x128xf32> -> vector<8x128xf32>
    %c0_38 = arith.constant 0 : index
    %c0_39 = arith.constant 0 : index
    %64 = vector.load %arg11[%c0_38, %c0_39] : memref<128x128xf32, #tpu.memory_space<vmem>>, vector<128x128xf32>
    %cst_40 = arith.constant dense<0.000000e+00> : vector<8x128xf32>
    %65 = tpu.matmul %63, %64, %cst_40 {dimension_numbers = #tpu.dot_dimension_numbers<[1], [0], [0], [1], [0, 0, 1, 1], [], []>} : vector<8x128xf32>, vector<128x128xf32>, vector<8x128xf32> -> vector<8x128xf32>
    %c0_41 = arith.constant 0 : index
    %c0_42 = arith.constant 0 : index
    %66 = vector.load %arg12[%c0_41, %c0_42] : memref<1x128xf32, #tpu.memory_space<vmem>>, vector<1x128xf32>
    %67 = vector.broadcast %66 : vector<1x128xf32> to vector<8x128xf32>
    %68 = arith.addf %65, %67 : vector<8x128xf32>
    %cst_43 = arith.constant dense<0xFF800000> : vector<8xf32>
    %69 = vector.multi_reduction <maximumf>, %68, %cst_43 [1] : vector<8x128xf32> to vector<8xf32>
    %70 = vector.shape_cast %69 : vector<8xf32> to vector<8x1xf32>
    %71 = vector.broadcast %70 : vector<8x1xf32> to vector<8x128xf32>
    %72 = arith.subf %68, %71 : vector<8x128xf32>
    %73 = math.exp %72 : vector<8x128xf32>
    %cst_44 = arith.constant dense<0.000000e+00> : vector<8xf32>
    %74 = vector.multi_reduction <add>, %73, %cst_44 [1] : vector<8x128xf32> to vector<8xf32>
    %75 = vector.shape_cast %74 : vector<8xf32> to vector<8x1xf32>
    %76 = vector.broadcast %75 : vector<8x1xf32> to vector<8x128xf32>
    %77 = arith.divf %73, %76 : vector<8x128xf32>
    %c0_45 = arith.constant 0 : index
    %c0_46 = arith.constant 0 : index
    %78 = vector.load %arg13[%c0_45, %c0_46] : memref<8x128xf32, #tpu.memory_space<vmem>>, vector<8x128xf32>
    tpu.vector_store %arg13[%c0_45, %c0_46], %77 {strides = array<i32>} : memref<8x128xf32, #tpu.memory_space<vmem>>, vector<8x128xf32>,
    return
  }
}

</mosaic_0001>

<llo_original>
// kernel: tpu_custom_call.1
$region0: #{tpu_custom_call.1}
  #allocation0 [shape = 'u32[]', space=smem, size = 0x4, offset = 0x4, fixed_abs, tag = 'smem constant byte address 0x4 - core index']
  #allocation1 [shape = 'u32[144,128]{1,0:T(1,128)}', space=vmem, size = 0x12000, scoped, tag = 'internal scratch']
  %s0 = inlined_call_operand.hbm [shape: f32[8,16], index: 0, kind: input, shape index: {}]
  %s1 = inlined_call_operand.hbm [shape: f32[16,128], index: 1, kind: input, shape index: {}]
  %s2 = inlined_call_operand.vmem [shape: f32[1,128], index: 2, kind: input, shape index: {}]
  %s3 = inlined_call_operand.hbm [shape: f32[128,128], index: 3, kind: input, shape index: {}]
  %s4 = inlined_call_operand.vmem [shape: f32[1,128], index: 4, kind: input, shape index: {}]
  %s5 = inlined_call_operand.hbm [shape: f32[128,128], index: 5, kind: input, shape index: {}]
  %s6 = inlined_call_operand.vmem [shape: f32[1,128], index: 6, kind: input, shape index: {}]
  %s7 = inlined_call_operand.hbm [shape: f32[128,128], index: 7, kind: input, shape index: {}]
  %s8 = inlined_call_operand.vmem [shape: f32[1,128], index: 8, kind: input, shape index: {}]
  %s9 = inlined_call_operand.hbm [shape: f32[128,384], index: 9, kind: input, shape index: {}]
  %s10 = inlined_call_operand.vmem [shape: f32[1,384], index: 10, kind: input, shape index: {}]
  %s11 = inlined_call_operand.hbm [shape: f32[128,128], index: 11, kind: input, shape index: {}]
  %s12 = inlined_call_operand.vmem [shape: f32[1,128], index: 12, kind: input, shape index: {}]
  %s13 = inlined_call_operand.hbm [shape: f32[8,128], index: 13, kind: output, shape index: {}]
  %s14 = sld [smem:[#allocation0]]
  $region90: #{tpu_custom_call.1} parent=0
    _
  %s16 = ssub.s32 1, %s14
  %s17 = scalar_select 0, %s16, %s14
  $region1: #{tpu_custom_call.1} parent=0
    #allocation2 [shape = 'u8[4096]{0}', space=vmem, size = 0x1000, scoped, tag = 'input window, operand 0, single buffered']
    #allocation3 [shape = 's32[1]{0}', space=sflag, size = 0x4, scoped, tag = 'scoped memory for tpu_custom_call.1']
    #allocation4 [shape = 's32[1]{0}', space=sflag, size = 0x4, scoped, tag = 'scoped memory for tpu_custom_call.1']
    #allocation5 [shape = 'u8[8192]{0}', space=vmem, size = 0x2000, scoped, tag = 'input window, operand 1, single buffered']
    #allocation6 [shape = 's32[1]{0}', space=sflag, size = 0x4, scoped, tag = 'scoped memory for tpu_custom_call.1']
    #allocation7 [shape = 'u8[65536]{0}', space=vmem, size = 0x10000, scoped, tag = 'input window, operand 3, single buffered']
    #allocation8 [shape = 'u8[65536]{0}', space=vmem, size = 0x10000, scoped, tag = 'input window, operand 5, single buffered']
    #allocation9 [shape = 's32[1]{0}', space=sflag, size = 0x4, scoped, tag = 'scoped memory for tpu_custom_call.1']
    #allocation10 [shape = 'u8[65536]{0}', space=vmem, size = 0x10000, scoped, tag = 'input window, operand 7, single buffered']
    #allocation11 [shape = 'u8[196608]{0}', space=vmem, size = 0x30000, scoped, tag = 'input window, operand 9, single buffered']
    #allocation12 [shape = 's32[1]{0}', space=sflag, size = 0x4, scoped, tag = 'scoped memory for tpu_custom_call.1']
    #allocation13 [shape = 'u8[65536]{0}', space=vmem, size = 0x10000, scoped, tag = 'input window, operand 11, single buffered']
    #allocation14 [shape = 'u8[4096]{0}', space=vmem, size = 0x1000, scoped, tag = 'output window, operand 0, single buffered']
    %18 = vsyncpa [#allocation3], 0
    %19 = vsyncpa [#allocation6], 0
    %20 = vsyncpa [#allocation9], 0
    %21 = vsyncpa [#allocation12], 0
    %22 = vsyncpa [#allocation4], 0
    // Predicated region
    $region2: #{tpu_custom_call.1} parent=1 // pred_check
      _
    $region3: #{tpu_custom_call.1} parent=1 // pred_check_branch
      %24 = sbr.rel (0) target = $region5
    $region4: #{tpu_custom_call.1} parent=1 // pred_region
      %s26 = ssub.s32 128, 128
      %27 = vsyncadd [#allocation3], %s26
      %s29 = sshll.u32 [#allocation2], 4
      %s30 = int_to_ptr.vmem [resolvable:$true] %s29
      %32 = dma.hbm_to_vmem [thread:$0]  %s0, 128, %s30, [#allocation3]
    $region5: #{tpu_custom_call.1} parent=1 // pred_fallthru
      _
    // Predicated region
    $region6: #{tpu_custom_call.1} parent=1 // pred_check
      _
    $region7: #{tpu_custom_call.1} parent=1 // pred_check_branch
      %34 = sbr.rel (0) target = $region9
    $region8: #{tpu_custom_call.1} parent=1 // pred_region
      %s36 = ssub.s32 256, 256
      %37 = vsyncadd [#allocation6], %s36
      %s38 = sshll.u32 [#allocation5], 4
      %s39 = int_to_ptr.vmem [resolvable:$true] %s38
      %44 = dma.hbm_to_vmem [thread:$0]  %s1, 256, %s39, [#allocation6], 128, 128, 8
    $region9: #{tpu_custom_call.1} parent=1 // pred_fallthru
      _
    // Predicated region
    $region10: #{tpu_custom_call.1} parent=1 // pred_check
      _
    $region11: #{tpu_custom_call.1} parent=1 // pred_check_branch
      %46 = sbr.rel (0) target = $region13
    $region12: #{tpu_custom_call.1} parent=1 // pred_region
      _
    $region13: #{tpu_custom_call.1} parent=1 // pred_fallthru
      _
    // Predicated region
    $region14: #{tpu_custom_call.1} parent=1 // pred_check
      _
    $region15: #{tpu_custom_call.1} parent=1 // pred_check_branch
      %48 = sbr.rel (0) target = $region17
    $region16: #{tpu_custom_call.1} parent=1 // pred_region
      %s50 = ssub.s32 2048, 2048
      %51 = vsyncadd [#allocation6], %s50
      %s52 = sshll.u32 [#allocation7], 4
      %s53 = int_to_ptr.vmem [resolvable:$true] %s52
      %58 = dma.hbm_to_vmem [thread:$0]  %s3, 2048, %s53, [#allocation6], 128, 128, 8
    $region17: #{tpu_custom_call.1} parent=1 // pred_fallthru
      _
    // Predicated region
    $region18: #{tpu_custom_call.1} parent=1 // pred_check
      _
    $region19: #{tpu_custom_call.1} parent=1 // pred_check_branch
      %60 = sbr.rel (0) target = $region21
    $region20: #{tpu_custom_call.1} parent=1 // pred_region
      _
    $region21: #{tpu_custom_call.1} parent=1 // pred_fallthru
      _
    // Predicated region
    $region22: #{tpu_custom_call.1} parent=1 // pred_check
      _
    $region23: #{tpu_custom_call.1} parent=1 // pred_check_branch
      %62 = sbr.rel (0) target = $region25
    $region24: #{tpu_custom_call.1} parent=1 // pred_region
      %s64 = ssub.s32 2048, 2048
      %65 = vsyncadd [#allocation9], %s64
      %s66 = sshll.u32 [#allocation8], 4
      %s67 = int_to_ptr.vmem [resolvable:$true] %s66
      %72 = dma.hbm_to_vmem [thread:$0]  %s5, 2048, %s67, [#allocation9], 128, 128, 8
    $region25: #{tpu_custom_call.1} parent=1 // pred_fallthru
      _
    // Predicated region
    $region26: #{tpu_custom_call.1} parent=1 // pred_check
      _
    $region27: #{tpu_custom_call.1} parent=1 // pred_check_branch
      %74 = sbr.rel (0) target = $region29
    $region28: #{tpu_custom_call.1} parent=1 // pred_region
      _
    $region29: #{tpu_custom_call.1} parent=1 // pred_fallthru
      _
    // Predicated region
    $region30: #{tpu_custom_call.1} parent=1 // pred_check
      _
    $region31: #{tpu_custom_call.1} parent=1 // pred_check_branch
      %76 = sbr.rel (0) target = $region33
    $region32: #{tpu_custom_call.1} parent=1 // pred_region
      %s78 = ssub.s32 2048, 2048
      %79 = vsyncadd [#allocation9], %s78
      %s80 = sshll.u32 [#allocation10], 4
      %s81 = int_to_ptr.vmem [resolvable:$true] %s80
      %86 = dma.hbm_to_vmem [thread:$0]  %s7, 2048, %s81, [#allocation9], 128, 128, 8
    $region33: #{tpu_custom_call.1} parent=1 // pred_fallthru
      _
    // Predicated region
    $region34: #{tpu_custom_call.1} parent=1 // pred_check
      _
    $region35: #{tpu_custom_call.1} parent=1 // pred_check_branch
      %88 = sbr.rel (0) target = $region37
    $region36: #{tpu_custom_call.1} parent=1 // pred_region
      _
    $region37: #{tpu_custom_call.1} parent=1 // pred_fallthru
      _
    // Predicated region
    $region38: #{tpu_custom_call.1} parent=1 // pred_check
      _
    $region39: #{tpu_custom_call.1} parent=1 // pred_check_branch
      %90 = sbr.rel (0) target = $region41
    $region40: #{tpu_custom_call.1} parent=1 // pred_region
      %s92 = ssub.s32 6144, 6144
      %93 = vsyncadd [#allocation12], %s92
      %s94 = sshll.u32 [#allocation11], 4
      %s95 = int_to_ptr.vmem [resolvable:$true] %s94
      %100 = dma.hbm_to_vmem [thread:$0]  %s9, 6144, %s95, [#allocation12], 384, 384, 24
    $region41: #{tpu_custom_call.1} parent=1 // pred_fallthru
      _
    // Predicated region
    $region42: #{tpu_custom_call.1} parent=1 // pred_check
      _
    $region43: #{tpu_custom_call.1} parent=1 // pred_check_branch
      %102 = sbr.rel (0) target = $region45
    $region44: #{tpu_custom_call.1} parent=1 // pred_region
      _
    $region45: #{tpu_custom_call.1} parent=1 // pred_fallthru
      _
    // Predicated region
    $region46: #{tpu_custom_call.1} parent=1 // pred_check
      _
    $region47: #{tpu_custom_call.1} parent=1 // pred_check_branch
      %104 = sbr.rel (0) target = $region49
    $region48: #{tpu_custom_call.1} parent=1 // pred_region
      %s106 = ssub.s32 2048, 2048
      %107 = vsyncadd [#allocation12], %s106
      %s108 = sshll.u32 [#allocation13], 4
      %s109 = int_to_ptr.vmem [resolvable:$true] %s108
      %114 = dma.hbm_to_vmem [thread:$0]  %s11, 2048, %s109, [#allocation12], 128, 128, 8
    $region49: #{tpu_custom_call.1} parent=1 // pred_fallthru
      _
    // Predicated region
    $region50: #{tpu_custom_call.1} parent=1 // pred_check
      _
    $region51: #{tpu_custom_call.1} parent=1 // pred_check_branch
      %116 = sbr.rel (0) target = $region53
    $region52: #{tpu_custom_call.1} parent=1 // pred_region
      _
    $region53: #{tpu_custom_call.1} parent=1 // pred_fallthru
      _
    // Predicated region
    $region54: #{tpu_custom_call.1} parent=1 // pred_check
      _
    $region55: #{tpu_custom_call.1} parent=1 // pred_check_branch
      %118 = sbr.rel (0) target = $region57
    $region56: #{tpu_custom_call.1} parent=1 // pred_region
      %119 = dma.done [#allocation3], 128
    $region57: #{tpu_custom_call.1} parent=1 // pred_fallthru
      _
    // Predicated region
    $region58: #{tpu_custom_call.1} parent=1 // pred_check
      _
    $region59: #{tpu_custom_call.1} parent=1 // pred_check_branch
      %121 = sbr.rel (0) target = $region61
    $region60: #{tpu_custom_call.1} parent=1 // pred_region
      %122 = dma.done [#allocation6], 256
    $region61: #{tpu_custom_call.1} parent=1 // pred_fallthru
      _
    // Predicated region
    $region62: #{tpu_custom_call.1} parent=1 // pred_check
      _
    $region63: #{tpu_custom_call.1} parent=1 // pred_check_branch
      %124 = sbr.rel (0) target = $region65
    $region64: #{tpu_custom_call.1} parent=1 // pred_region
      %125 = dma.done [#allocation6], 2048
    $region65: #{tpu_custom_call.1} parent=1 // pred_fallthru
      _
    // Predicated region
    $region66: #{tpu_custom_call.1} parent=1 // pred_check
      _
    $region67: #{tpu_custom_call.1} parent=1 // pred_check_branch
      %127 = sbr.rel (0) target = $region69
    $region68: #{tpu_custom_call.1} parent=1 // pred_region
      %128 = dma.done [#allocation9], 2048
    $region69: #{tpu_custom_call.1} parent=1 // pred_fallthru
      _
    // Predicated region
    $region70: #{tpu_custom_call.1} parent=1 // pred_check
      _
    $region71: #{tpu_custom_call.1} parent=1 // pred_check_branch
      %130 = sbr.rel (0) target = $region73
    $region72: #{tpu_custom_call.1} parent=1 // pred_region
      %131 = dma.done [#allocation9], 2048
    $region73: #{tpu_custom_call.1} parent=1 // pred_fallthru
      _
    // Predicated region
    $region74: #{tpu_custom_call.1} parent=1 // pred_check
      _
    $region75: #{tpu_custom_call.1} parent=1 // pred_check_branch
      %133 = sbr.rel (0) target = $region77
    $region76: #{tpu_custom_call.1} parent=1 // pred_region
      %134 = dma.done [#allocation12], 6144
    $region77: #{tpu_custom_call.1} parent=1 // pred_fallthru
      _
    // Predicated region
    $region78: #{tpu_custom_call.1} parent=1 // pred_check
      _
    $region79: #{tpu_custom_call.1} parent=1 // pred_check_branch
      %136 = sbr.rel (0) target = $region81
    $region80: #{tpu_custom_call.1} parent=1 // pred_region
      %137 = dma.done [#allocation12], 2048
    $region81: #{tpu_custom_call.1} parent=1 // pred_fallthru
      _
    %v138 = vld [vmem:[#allocation2] sm:$0xff]
    %v139 = vld [vmem:[#allocation5] sm:$0xff]
    %v140 = vld [vmem:[#allocation5 + $0x8] sm:$0xff]
    %v141 = vld [vmem:[%s2] sm:$0x1]
    %v143 = vlaneseq
    %v144 = vshrl.u32 %v143, 7
    %v145 = vsub.s32 0, %v144
    %v146 = vrot.slane %v141, %v145
    %vm148 = vcmask 130048
    %v150 = vsel %vm148, %v138, 0
    %152 = vmatprep.subr.mxu0 0.0
    %153 = vmatpush1.msra.mxu0 %v139
    %154 = vmatprep.subr.mxu0 0.0
    %155 = vmatpush1.msra.mxu0 %v140
    %156 = vmatprep.subr.mxu0 0.0
    %157 = vmatpush1.msra.mxu0 0.0
    %158 = vmatprep.subr.mxu0 0.0
    %159 = vmatpush1.msra.mxu0 0.0
    %160 = vmatprep.subr.mxu0 0.0
    %161 = vmatpush1.msra.mxu0 0.0
    %162 = vmatprep.subr.mxu0 0.0
    %163 = vmatpush1.msra.mxu0 0.0
    %164 = vmatprep.subr.mxu0 0.0
    %165 = vmatpush1.msra.mxu0 0.0
    %166 = vmatprep.subr.mxu0 0.0
    %167 = vmatpush1.msra.mxu0 0.0
    %168 = vmatprep.subr.mxu0 0.0
    %169 = vmatpush1.msra.mxu0 0.0
    %170 = vmatprep.subr.mxu0 0.0
    %171 = vmatpush1.msra.mxu0 0.0
    %172 = vmatprep.subr.mxu0 0.0
    %173 = vmatpush1.msra.mxu0 0.0
    %174 = vmatprep.subr.mxu0 0.0
    %175 = vmatpush1.msra.mxu0 0.0
    %176 = vmatprep.subr.mxu0 0.0
    %177 = vmatpush1.msra.mxu0 0.0
    %178 = vmatprep.subr.mxu0 0.0
    %179 = vmatpush1.msra.mxu0 0.0
    %180 = vmatprep.subr.mxu0 0.0
    %181 = vmatpush1.msra.mxu0 0.0
    %182 = vmatprep.subr.mxu0 0.0
    %183 = vmatpush1.msra.mxu0 0.0
    %184 = vmatprep.subr.mxu0 0.0
    %185 = vmatpush1.msra.mxu0 0.0
    %186 = vmatprep.subr.mxu0 0.0
    %187 = vmatpush1.msra.mxu0 0.0
    %188 = vmatprep.subr.mxu0 0.0
    %189 = vmatpush1.msra.mxu0 0.0
    %190 = vmatprep.subr.mxu0 0.0
    %191 = vmatpush1.msra.mxu0 0.0
    %192 = vmatprep.subr.mxu0 0.0
    %193 = vmatpush1.msra.mxu0 0.0
    %194 = vmatprep.subr.mxu0 0.0
    %195 = vmatpush1.msra.mxu0 0.0
    %196 = vmatprep.subr.mxu0 0.0
    %197 = vmatpush1.msra.mxu0 0.0
    %198 = vmatprep.subr.mxu0 0.0
    %199 = vmatpush1.msra.mxu0 0.0
    %200 = vmatprep.subr.mxu0 0.0
    %201 = vmatpush1.msra.mxu0 0.0
    %202 = vmatprep.subr.mxu0 0.0
    %203 = vmatpush1.msra.mxu0 0.0
    %204 = vmatprep.subr.mxu0 0.0
    %205 = vmatpush1.msra.mxu0 0.0
    %206 = vmatprep.subr.mxu0 0.0
    %207 = vmatpush1.msra.mxu0 0.0
    %208 = vmatprep.subr.mxu0 0.0
    %209 = vmatpush1.msra.mxu0 0.0
    %210 = vmatprep.subr.mxu0 0.0
    %211 = vmatpush1.msra.mxu0 0.0
    %212 = vmatprep.subr.mxu0 0.0
    %213 = vmatpush1.msra.mxu0 0.0
    %214 = vmatprep.subr.mxu0 0.0
    %215 = vmatpush1.msra.mxu0 0.0
    %216 = vmatprep.mubr.f32.mxu0 0.0
    %217 = vmatmul.mubr.f32.gmra.mrb[0].mxu0 %v150
    %v218 = vpop.f32.mrb[0].mxu0
    %v219 = vadd.f32 %v146, %v218
    %v220 = vpop.f32.mrb[0].mxu0
    %221 = vdwg.mxu0
    %vm222 = vcmp.ge.f32.partialorder %v219, 0.0
    %v223 = vmul.f32 %v219, 0.01
    %v224 = vsel %vm222, %v219, %v223
    %v225 = vld [vmem:[#allocation7] sm:$0xff]
    %v226 = vld [vmem:[#allocation7 + $0x8] sm:$0xff]
    %v227 = vld [vmem:[#allocation7 + $0x10] sm:$0xff]
    %v228 = vld [vmem:[#allocation7 + $0x18] sm:$0xff]
    %v229 = vld [vmem:[#allocation7 + $0x20] sm:$0xff]
    %v230 = vld [vmem:[#allocation7 + $0x28] sm:$0xff]
    %v231 = vld [vmem:[#allocation7 + $0x30] sm:$0xff]
    %v232 = vld [vmem:[#allocation7 + $0x38] sm:$0xff]
    %v233 = vld [vmem:[#allocation7 + $0x40] sm:$0xff]
    %v234 = vld [vmem:[#allocation7 + $0x48] sm:$0xff]
    %v235 = vld [vmem:[#allocation7 + $0x50] sm:$0xff]
    %v236 = vld [vmem:[#allocation7 + $0x58] sm:$0xff]
    %v237 = vld [vmem:[#allocation7 + $0x60] sm:$0xff]
    %v238 = vld [vmem:[#allocation7 + $0x68] sm:$0xff]
    %v239 = vld [vmem:[#allocation7 + $0x70] sm:$0xff]
    %v240 = vld [vmem:[#allocation7 + $0x78] sm:$0xff]
    %v241 = vld [vmem:[%s4] sm:$0x1]
    %v243 = vlaneseq
    %v244 = vshrl.u32 %v243, 7
    %v245 = vsub.s32 0, %v244
    %v246 = vrot.slane %v241, %v245
    %248 = vmatprep.subr.mxu0 0.0
    %249 = vmatpush1.msra.mxu0 %v225
    %250 = vmatprep.subr.mxu0 0.0
    %251 = vmatpush1.msra.mxu0 %v226
    %252 = vmatprep.subr.mxu0 0.0
    %253 = vmatpush1.msra.mxu0 %v227
    %254 = vmatprep.subr.mxu0 0.0
    %255 = vmatpush1.msra.mxu0 %v228
    %256 = vmatprep.subr.mxu0 0.0
    %257 = vmatpush1.msra.mxu0 %v229
    %258 = vmatprep.subr.mxu0 0.0
    %259 = vmatpush1.msra.mxu0 %v230
    %260 = vmatprep.subr.mxu0 0.0
    %261 = vmatpush1.msra.mxu0 %v231
    %262 = vmatprep.subr.mxu0 0.0
    %263 = vmatpush1.msra.mxu0 %v232
    %264 = vmatprep.subr.mxu0 0.0
    %265 = vmatpush1.msra.mxu0 %v233
    %266 = vmatprep.subr.mxu0 0.0
    %267 = vmatpush1.msra.mxu0 %v234
    %268 = vmatprep.subr.mxu0 0.0
    %269 = vmatpush1.msra.mxu0 %v235
    %270 = vmatprep.subr.mxu0 0.0
    %271 = vmatpush1.msra.mxu0 %v236
    %272 = vmatprep.subr.mxu0 0.0
    %273 = vmatpush1.msra.mxu0 %v237
    %274 = vmatprep.subr.mxu0 0.0
    %275 = vmatpush1.msra.mxu0 %v238
    %276 = vmatprep.subr.mxu0 0.0
    %277 = vmatpush1.msra.mxu0 %v239
    %278 = vmatprep.subr.mxu0 0.0
    %279 = vmatpush1.msra.mxu0 %v240
    %280 = vmatprep.subr.mxu0 0.0
    %281 = vmatpush1.msra.mxu0 0.0
    %282 = vmatprep.subr.mxu0 0.0
    %283 = vmatpush1.msra.mxu0 0.0
    %284 = vmatprep.subr.mxu0 0.0
    %285 = vmatpush1.msra.mxu0 0.0
    %286 = vmatprep.subr.mxu0 0.0
    %287 = vmatpush1.msra.mxu0 0.0
    %288 = vmatprep.subr.mxu0 0.0
    %289 = vmatpush1.msra.mxu0 0.0
    %290 = vmatprep.subr.mxu0 0.0
    %291 = vmatpush1.msra.mxu0 0.0
    %292 = vmatprep.subr.mxu0 0.0
    %293 = vmatpush1.msra.mxu0 0.0
    %294 = vmatprep.subr.mxu0 0.0
    %295 = vmatpush1.msra.mxu0 0.0
    %296 = vmatprep.subr.mxu0 0.0
    %297 = vmatpush1.msra.mxu0 0.0
    %298 = vmatprep.subr.mxu0 0.0
    %299 = vmatpush1.msra.mxu0 0.0
    %300 = vmatprep.subr.mxu0 0.0
    %301 = vmatpush1.msra.mxu0 0.0
    %302 = vmatprep.subr.mxu0 0.0
    %303 = vmatpush1.msra.mxu0 0.0
    %304 = vmatprep.subr.mxu0 0.0
    %305 = vmatpush1.msra.mxu0 0.0
    %306 = vmatprep.subr.mxu0 0.0
    %307 = vmatpush1.msra.mxu0 0.0
    %308 = vmatprep.subr.mxu0 0.0
    %309 = vmatpush1.msra.mxu0 0.0
    %310 = vmatprep.subr.mxu0 0.0
    %311 = vmatpush1.msra.mxu0 0.0
    %312 = vmatprep.mubr.f32.mxu0 0.0
    %313 = vmatmul.mubr.f32.gmra.mrb[0].mxu0 %v224
    %v314 = vpop.f32.mrb[0].mxu0
    %v315 = vadd.f32 %v246, %v314
    %v316 = vpop.f32.mrb[0].mxu0
    %317 = vdwg.mxu0
    %vm318 = vcmp.ge.f32.partialorder %v315, 0.0
    %v319 = vmul.f32 %v315, 0.01
    %v320 = vsel %vm318, %v315, %v319
    %v321 = vld [vmem:[#allocation8] sm:$0xff]
    %v322 = vld [vmem:[#allocation8 + $0x8] sm:$0xff]
    %v323 = vld [vmem:[#allocation8 + $0x10] sm:$0xff]
    %v324 = vld [vmem:[#allocation8 + $0x18] sm:$0xff]
    %v325 = vld [vmem:[#allocation8 + $0x20] sm:$0xff]
    %v326 = vld [vmem:[#allocation8 + $0x28] sm:$0xff]
    %v327 = vld [vmem:[#allocation8 + $0x30] sm:$0xff]
    %v328 = vld [vmem:[#allocation8 + $0x38] sm:$0xff]
    %v329 = vld [vmem:[#allocation8 + $0x40] sm:$0xff]
    %v330 = vld [vmem:[#allocation8 + $0x48] sm:$0xff]
    %v331 = vld [vmem:[#allocation8 + $0x50] sm:$0xff]
    %v332 = vld [vmem:[#allocation8 + $0x58] sm:$0xff]
    %v333 = vld [vmem:[#allocation8 + $0x60] sm:$0xff]
    %v334 = vld [vmem:[#allocation8 + $0x68] sm:$0xff]
    %v335 = vld [vmem:[#allocation8 + $0x70] sm:$0xff]
    %v336 = vld [vmem:[#allocation8 + $0x78] sm:$0xff]
    %v337 = vld [vmem:[%s6] sm:$0x1]
    %v339 = vlaneseq
    %v340 = vshrl.u32 %v339, 7
    %v341 = vsub.s32 0, %v340
    %v342 = vrot.slane %v337, %v341
    %344 = vmatprep.subr.mxu0 0.0
    %345 = vmatpush1.msra.mxu0 %v321
    %346 = vmatprep.subr.mxu0 0.0
    %347 = vmatpush1.msra.mxu0 %v322
    %348 = vmatprep.subr.mxu0 0.0
    %349 = vmatpush1.msra.mxu0 %v323
    %350 = vmatprep.subr.mxu0 0.0
    %351 = vmatpush1.msra.mxu0 %v324
    %352 = vmatprep.subr.mxu0 0.0
    %353 = vmatpush1.msra.mxu0 %v325
    %354 = vmatprep.subr.mxu0 0.0
    %355 = vmatpush1.msra.mxu0 %v326
    %356 = vmatprep.subr.mxu0 0.0
    %357 = vmatpush1.msra.mxu0 %v327
    %358 = vmatprep.subr.mxu0 0.0
    %359 = vmatpush1.msra.mxu0 %v328
    %360 = vmatprep.subr.mxu0 0.0
    %361 = vmatpush1.msra.mxu0 %v329
    %362 = vmatprep.subr.mxu0 0.0
    %363 = vmatpush1.msra.mxu0 %v330
    %364 = vmatprep.subr.mxu0 0.0
    %365 = vmatpush1.msra.mxu0 %v331
    %366 = vmatprep.subr.mxu0 0.0
    %367 = vmatpush1.msra.mxu0 %v332
    %368 = vmatprep.subr.mxu0 0.0
    %369 = vmatpush1.msra.mxu0 %v333
    %370 = vmatprep.subr.mxu0 0.0
    %371 = vmatpush1.msra.mxu0 %v334
    %372 = vmatprep.subr.mxu0 0.0
    %373 = vmatpush1.msra.mxu0 %v335
    %374 = vmatprep.subr.mxu0 0.0
    %375 = vmatpush1.msra.mxu0 %v336
    %376 = vmatprep.subr.mxu0 0.0
    %377 = vmatpush1.msra.mxu0 0.0
    %378 = vmatprep.subr.mxu0 0.0
    %379 = vmatpush1.msra.mxu0 0.0
    %380 = vmatprep.subr.mxu0 0.0
    %381 = vmatpush1.msra.mxu0 0.0
    %382 = vmatprep.subr.mxu0 0.0
    %383 = vmatpush1.msra.mxu0 0.0
    %384 = vmatprep.subr.mxu0 0.0
    %385 = vmatpush1.msra.mxu0 0.0
    %386 = vmatprep.subr.mxu0 0.0
    %387 = vmatpush1.msra.mxu0 0.0
    %388 = vmatprep.subr.mxu0 0.0
    %389 = vmatpush1.msra.mxu0 0.0
    %390 = vmatprep.subr.mxu0 0.0
    %391 = vmatpush1.msra.mxu0 0.0
    %392 = vmatprep.subr.mxu0 0.0
    %393 = vmatpush1.msra.mxu0 0.0
    %394 = vmatprep.subr.mxu0 0.0
    %395 = vmatpush1.msra.mxu0 0.0
    %396 = vmatprep.subr.mxu0 0.0
    %397 = vmatpush1.msra.mxu0 0.0
    %398 = vmatprep.subr.mxu0 0.0
    %399 = vmatpush1.msra.mxu0 0.0
    %400 = vmatprep.subr.mxu0 0.0
    %401 = vmatpush1.msra.mxu0 0.0
    %402 = vmatprep.subr.mxu0 0.0
    %403 = vmatpush1.msra.mxu0 0.0
    %404 = vmatprep.subr.mxu0 0.0
    %405 = vmatpush1.msra.mxu0 0.0
    %406 = vmatprep.subr.mxu0 0.0
    %407 = vmatpush1.msra.mxu0 0.0
    %408 = vmatprep.mubr.f32.mxu0 0.0
    %409 = vmatmul.mubr.f32.gmra.mrb[0].mxu0 %v320
    %v410 = vpop.f32.mrb[0].mxu0
    %v411 = vadd.f32 %v342, %v410
    %v412 = vpop.f32.mrb[0].mxu0
    %413 = vdwg.mxu0
    %vm414 = vcmp.ge.f32.partialorder %v411, 0.0
    %v415 = vmul.f32 %v411, 0.01
    %v416 = vsel %vm414, %v411, %v415
    %v417 = vld [vmem:[#allocation10] sm:$0xff]
    %v418 = vld [vmem:[#allocation10 + $0x8] sm:$0xff]
    %v419 = vld [vmem:[#allocation10 + $0x10] sm:$0xff]
    %v420 = vld [vmem:[#allocation10 + $0x18] sm:$0xff]
    %v421 = vld [vmem:[#allocation10 + $0x20] sm:$0xff]
    %v422 = vld [vmem:[#allocation10 + $0x28] sm:$0xff]
    %v423 = vld [vmem:[#allocation10 + $0x30] sm:$0xff]
    %v424 = vld [vmem:[#allocation10 + $0x38] sm:$0xff]
    %v425 = vld [vmem:[#allocation10 + $0x40] sm:$0xff]
    %v426 = vld [vmem:[#allocation10 + $0x48] sm:$0xff]
    %v427 = vld [vmem:[#allocation10 + $0x50] sm:$0xff]
    %v428 = vld [vmem:[#allocation10 + $0x58] sm:$0xff]
    %v429 = vld [vmem:[#allocation10 + $0x60] sm:$0xff]
    %v430 = vld [vmem:[#allocation10 + $0x68] sm:$0xff]
    %v431 = vld [vmem:[#allocation10 + $0x70] sm:$0xff]
    %v432 = vld [vmem:[#allocation10 + $0x78] sm:$0xff]
    %v433 = vld [vmem:[%s8] sm:$0x1]
    %v435 = vlaneseq
    %v436 = vshrl.u32 %v435, 7
    %v437 = vsub.s32 0, %v436
    %v438 = vrot.slane %v433, %v437
    %440 = vmatprep.subr.mxu0 0.0
    %441 = vmatpush1.msra.mxu0 %v417
    %442 = vmatprep.subr.mxu0 0.0
    %443 = vmatpush1.msra.mxu0 %v418
    %444 = vmatprep.subr.mxu0 0.0
    %445 = vmatpush1.msra.mxu0 %v419
    %446 = vmatprep.subr.mxu0 0.0
    %447 = vmatpush1.msra.mxu0 %v420
    %448 = vmatprep.subr.mxu0 0.0
    %449 = vmatpush1.msra.mxu0 %v421
    %450 = vmatprep.subr.mxu0 0.0
    %451 = vmatpush1.msra.mxu0 %v422
    %452 = vmatprep.subr.mxu0 0.0
    %453 = vmatpush1.msra.mxu0 %v423
    %454 = vmatprep.subr.mxu0 0.0
    %455 = vmatpush1.msra.mxu0 %v424
    %456 = vmatprep.subr.mxu0 0.0
    %457 = vmatpush1.msra.mxu0 %v425
    %458 = vmatprep.subr.mxu0 0.0
    %459 = vmatpush1.msra.mxu0 %v426
    %460 = vmatprep.subr.mxu0 0.0
    %461 = vmatpush1.msra.mxu0 %v427
    %462 = vmatprep.subr.mxu0 0.0
    %463 = vmatpush1.msra.mxu0 %v428
    %464 = vmatprep.subr.mxu0 0.0
    %465 = vmatpush1.msra.mxu0 %v429
    %466 = vmatprep.subr.mxu0 0.0
    %467 = vmatpush1.msra.mxu0 %v430
    %468 = vmatprep.subr.mxu0 0.0
    %469 = vmatpush1.msra.mxu0 %v431
    %470 = vmatprep.subr.mxu0 0.0
    %471 = vmatpush1.msra.mxu0 %v432
    %472 = vmatprep.subr.mxu0 0.0
    %473 = vmatpush1.msra.mxu0 0.0
    %474 = vmatprep.subr.mxu0 0.0
    %475 = vmatpush1.msra.mxu0 0.0
    %476 = vmatprep.subr.mxu0 0.0
    %477 = vmatpush1.msra.mxu0 0.0
    %478 = vmatprep.subr.mxu0 0.0
    %479 = vmatpush1.msra.mxu0 0.0
    %480 = vmatprep.subr.mxu0 0.0
    %481 = vmatpush1.msra.mxu0 0.0
    %482 = vmatprep.subr.mxu0 0.0
    %483 = vmatpush1.msra.mxu0 0.0
    %484 = vmatprep.subr.mxu0 0.0
    %485 = vmatpush1.msra.mxu0 0.0
    %486 = vmatprep.subr.mxu0 0.0
    %487 = vmatpush1.msra.mxu0 0.0
    %488 = vmatprep.subr.mxu0 0.0
    %489 = vmatpush1.msra.mxu0 0.0
    %490 = vmatprep.subr.mxu0 0.0
    %491 = vmatpush1.msra.mxu0 0.0
    %492 = vmatprep.subr.mxu0 0.0
    %493 = vmatpush1.msra.mxu0 0.0
    %494 = vmatprep.subr.mxu0 0.0
    %495 = vmatpush1.msra.mxu0 0.0
    %496 = vmatprep.subr.mxu0 0.0
    %497 = vmatpush1.msra.mxu0 0.0
    %498 = vmatprep.subr.mxu0 0.0
    %499 = vmatpush1.msra.mxu0 0.0
    %500 = vmatprep.subr.mxu0 0.0
    %501 = vmatpush1.msra.mxu0 0.0
    %502 = vmatprep.subr.mxu0 0.0
    %503 = vmatpush1.msra.mxu0 0.0
    %504 = vmatprep.mubr.f32.mxu0 0.0
    %505 = vmatmul.mubr.f32.gmra.mrb[0].mxu0 %v416
    %v506 = vpop.f32.mrb[0].mxu0
    %v507 = vadd.f32 %v438, %v506
    %v508 = vpop.f32.mrb[0].mxu0
    %509 = vdwg.mxu0
    %v510 = vadd.f32 %v507, %v320
    %vm511 = vcmp.ge.f32.partialorder %v510, 0.0
    %v512 = vmul.f32 %v510, 0.01
    %v513 = vsel %vm511, %v510, %v512
    %v514 = vld [vmem:[#allocation11] sm:$0xff]
    %v515 = vld [vmem:[#allocation11 + $0x8] sm:$0xff]
    %v516 = vld [vmem:[#allocation11 + $0x10] sm:$0xff]
    %v517 = vld [vmem:[#allocation11 + $0x18] sm:$0xff]
    %v518 = vld [vmem:[#allocation11 + $0x20] sm:$0xff]
    %v519 = vld [vmem:[#allocation11 + $0x28] sm:$0xff]
    %v520 = vld [vmem:[#allocation11 + $0x30] sm:$0xff]
    %v521 = vld [vmem:[#allocation11 + $0x38] sm:$0xff]
    %v522 = vld [vmem:[#allocation11 + $0x40] sm:$0xff]
    %v523 = vld [vmem:[#allocation11 + $0x48] sm:$0xff]
    %v524 = vld [vmem:[#allocation11 + $0x50] sm:$0xff]
    %v525 = vld [vmem:[#allocation11 + $0x58] sm:$0xff]
    %v526 = vld [vmem:[#allocation11 + $0x60] sm:$0xff]
    %v527 = vld [vmem:[#allocation11 + $0x68] sm:$0xff]
    %v528 = vld [vmem:[#allocation11 + $0x70] sm:$0xff]
    %v529 = vld [vmem:[#allocation11 + $0x78] sm:$0xff]
    %v530 = vld [vmem:[#allocation11 + $0x80] sm:$0xff]
    %v531 = vld [vmem:[#allocation11 + $0x88] sm:$0xff]
    %v532 = vld [vmem:[#allocation11 + $0x90] sm:$0xff]
    %v533 = vld [vmem:[#allocation11 + $0x98] sm:$0xff]
    %v534 = vld [vmem:[#allocation11 + $0xa0] sm:$0xff]
    %v535 = vld [vmem:[#allocation11 + $0xa8] sm:$0xff]
    %v536 = vld [vmem:[#allocation11 + $0xb0] sm:$0xff]
    %v537 = vld [vmem:[#allocation11 + $0xb8] sm:$0xff]
    %v538 = vld [vmem:[#allocation11 + $0xc0] sm:$0xff]
    %v539 = vld [vmem:[#allocation11 + $0xc8] sm:$0xff]
    %v540 = vld [vmem:[#allocation11 + $0xd0] sm:$0xff]
    %v541 = vld [vmem:[#allocation11 + $0xd8] sm:$0xff]
    %v542 = vld [vmem:[#allocation11 + $0xe0] sm:$0xff]
    %v543 = vld [vmem:[#allocation11 + $0xe8] sm:$0xff]
    %v544 = vld [vmem:[#allocation11 + $0xf0] sm:$0xff]
    %v545 = vld [vmem:[#allocation11 + $0xf8] sm:$0xff]
    %v546 = vld [vmem:[#allocation11 + $0x100] sm:$0xff]
    %v547 = vld [vmem:[#allocation11 + $0x108] sm:$0xff]
    %v548 = vld [vmem:[#allocation11 + $0x110] sm:$0xff]
    %v549 = vld [vmem:[#allocation11 + $0x118] sm:$0xff]
    %v550 = vld [vmem:[#allocation11 + $0x120] sm:$0xff]
    %v551 = vld [vmem:[#allocation11 + $0x128] sm:$0xff]
    %v552 = vld [vmem:[#allocation11 + $0x130] sm:$0xff]
    %v553 = vld [vmem:[#allocation11 + $0x138] sm:$0xff]
    %v554 = vld [vmem:[#allocation11 + $0x140] sm:$0xff]
    %v555 = vld [vmem:[#allocation11 + $0x148] sm:$0xff]
    %v556 = vld [vmem:[#allocation11 + $0x150] sm:$0xff]
    %v557 = vld [vmem:[#allocation11 + $0x158] sm:$0xff]
    %v558 = vld [vmem:[#allocation11 + $0x160] sm:$0xff]
    %v559 = vld [vmem:[#allocation11 + $0x168] sm:$0xff]
    %v560 = vld [vmem:[#allocation11 + $0x170] sm:$0xff]
    %v561 = vld [vmem:[#allocation11 + $0x178] sm:$0xff]
    %v562 = vld [vmem:[%s10] sm:$0x7]
    %v564 = vlaneseq
    %v565 = vshrl.u32 %v564, 7
    %v566 = vsub.s32 0, %v565
    %v567 = vrot.slane %v562, %v566
    %v568 = vlaneseq
    %v569 = vshrl.u32 %v568, 7
    %v570 = vsub.s32 1, %v569
    %v571 = vrot.slane %v562, %v570
    %v572 = vlaneseq
    %v573 = vshrl.u32 %v572, 7
    %v574 = vsub.s32 2, %v573
    %v575 = vrot.slane %v562, %v574
    %579 = vmatprep.subr.mxu0 %v515
    %580 = vmatpush1.msra.mxu0 %v514
    %581 = vmatprep.subr.mxu0 %v518
    %582 = vmatpush1.msra.mxu0 %v517
    %583 = vmatprep.subr.mxu0 %v521
    %584 = vmatpush1.msra.mxu0 %v520
    %585 = vmatprep.subr.mxu0 %v524
    %586 = vmatpush1.msra.mxu0 %v523
    %587 = vmatprep.subr.mxu0 %v527
    %588 = vmatpush1.msra.mxu0 %v526
    %589 = vmatprep.subr.mxu0 %v530
    %590 = vmatpush1.msra.mxu0 %v529
    %591 = vmatprep.subr.mxu0 %v533
    %592 = vmatpush1.msra.mxu0 %v532
    %593 = vmatprep.subr.mxu0 %v536
    %594 = vmatpush1.msra.mxu0 %v535
    %595 = vmatprep.subr.mxu0 %v539
    %596 = vmatpush1.msra.mxu0 %v538
    %597 = vmatprep.subr.mxu0 %v542
    %598 = vmatpush1.msra.mxu0 %v541
    %599 = vmatprep.subr.mxu0 %v545
    %600 = vmatpush1.msra.mxu0 %v544
    %601 = vmatprep.subr.mxu0 %v548
    %602 = vmatpush1.msra.mxu0 %v547
    %603 = vmatprep.subr.mxu0 %v551
    %604 = vmatpush1.msra.mxu0 %v550
    %605 = vmatprep.subr.mxu0 %v554
    %606 = vmatpush1.msra.mxu0 %v553
    %607 = vmatprep.subr.mxu0 %v557
    %608 = vmatpush1.msra.mxu0 %v556
    %609 = vmatprep.subr.mxu0 %v560
    %610 = vmatpush1.msra.mxu0 %v559
    %611 = vmatprep.subr.mxu0 0.0
    %612 = vmatpush1.msra.mxu0 0.0
    %613 = vmatprep.subr.mxu0 0.0
    %614 = vmatpush1.msra.mxu0 0.0
    %615 = vmatprep.subr.mxu0 0.0
    %616 = vmatpush1.msra.mxu0 0.0
    %617 = vmatprep.subr.mxu0 0.0
    %618 = vmatpush1.msra.mxu0 0.0
    %619 = vmatprep.subr.mxu0 0.0
    %620 = vmatpush1.msra.mxu0 0.0
    %621 = vmatprep.subr.mxu0 0.0
    %622 = vmatpush1.msra.mxu0 0.0
    %623 = vmatprep.subr.mxu0 0.0
    %624 = vmatpush1.msra.mxu0 0.0
    %625 = vmatprep.subr.mxu0 0.0
    %626 = vmatpush1.msra.mxu0 0.0
    %627 = vmatprep.subr.mxu0 0.0
    %628 = vmatpush1.msra.mxu0 0.0
    %629 = vmatprep.subr.mxu0 0.0
    %630 = vmatpush1.msra.mxu0 0.0
    %631 = vmatprep.subr.mxu0 0.0
    %632 = vmatpush1.msra.mxu0 0.0
    %633 = vmatprep.subr.mxu0 0.0
    %634 = vmatpush1.msra.mxu0 0.0
    %635 = vmatprep.subr.mxu0 0.0
    %636 = vmatpush1.msra.mxu0 0.0
    %637 = vmatprep.subr.mxu0 0.0
    %638 = vmatpush1.msra.mxu0 0.0
    %639 = vmatprep.subr.mxu0 0.0
    %640 = vmatpush1.msra.mxu0 0.0
    %641 = vmatprep.subr.mxu0 0.0
    %642 = vmatpush1.msra.mxu0 0.0
    %643 = vmatprep.mubr.f32.mxu0 0.0
    %644 = vmatmul.mubr.f32.gmra.mrb[0].mxu0 %v513
    %v645 = vpop.f32.mrb[0].mxu0
    %v646 = vadd.f32 %v567, %v645
    %v647 = vpop.f32.mrb[0].mxu0
    %v648 = vadd.f32 %v571, %v647
    %649 = vdwg.mxu0
    %650 = vmatprep.subr.mxu0 0.0
    %651 = vmatpush1.msra.mxu0 %v516
    %652 = vmatprep.subr.mxu0 0.0
    %653 = vmatpush1.msra.mxu0 %v519
    %654 = vmatprep.subr.mxu0 0.0
    %655 = vmatpush1.msra.mxu0 %v522
    %656 = vmatprep.subr.mxu0 0.0
    %657 = vmatpush1.msra.mxu0 %v525
    %658 = vmatprep.subr.mxu0 0.0
    %659 = vmatpush1.msra.mxu0 %v528
    %660 = vmatprep.subr.mxu0 0.0
    %661 = vmatpush1.msra.mxu0 %v531
    %662 = vmatprep.subr.mxu0 0.0
    %663 = vmatpush1.msra.mxu0 %v534
    %664 = vmatprep.subr.mxu0 0.0
    %665 = vmatpush1.msra.mxu0 %v537
    %666 = vmatprep.subr.mxu0 0.0
    %667 = vmatpush1.msra.mxu0 %v540
    %668 = vmatprep.subr.mxu0 0.0
    %669 = vmatpush1.msra.mxu0 %v543
    %670 = vmatprep.subr.mxu0 0.0
    %671 = vmatpush1.msra.mxu0 %v546
    %672 = vmatprep.subr.mxu0 0.0
    %673 = vmatpush1.msra.mxu0 %v549
    %674 = vmatprep.subr.mxu0 0.0
    %675 = vmatpush1.msra.mxu0 %v552
    %676 = vmatprep.subr.mxu0 0.0
    %677 = vmatpush1.msra.mxu0 %v555
    %678 = vmatprep.subr.mxu0 0.0
    %679 = vmatpush1.msra.mxu0 %v558
    %680 = vmatprep.subr.mxu0 0.0
    %681 = vmatpush1.msra.mxu0 %v561
    %682 = vmatprep.subr.mxu0 0.0
    %683 = vmatpush1.msra.mxu0 0.0
    %684 = vmatprep.subr.mxu0 0.0
    %685 = vmatpush1.msra.mxu0 0.0
    %686 = vmatprep.subr.mxu0 0.0
    %687 = vmatpush1.msra.mxu0 0.0
    %688 = vmatprep.subr.mxu0 0.0
    %689 = vmatpush1.msra.mxu0 0.0
    %690 = vmatprep.subr.mxu0 0.0
    %691 = vmatpush1.msra.mxu0 0.0
    %692 = vmatprep.subr.mxu0 0.0
    %693 = vmatpush1.msra.mxu0 0.0
    %694 = vmatprep.subr.mxu0 0.0
    %695 = vmatpush1.msra.mxu0 0.0
    %696 = vmatprep.subr.mxu0 0.0
    %697 = vmatpush1.msra.mxu0 0.0
    %698 = vmatprep.subr.mxu0 0.0
    %699 = vmatpush1.msra.mxu0 0.0
    %700 = vmatprep.subr.mxu0 0.0
    %701 = vmatpush1.msra.mxu0 0.0
    %702 = vmatprep.subr.mxu0 0.0
    %703 = vmatpush1.msra.mxu0 0.0
    %704 = vmatprep.subr.mxu0 0.0
    %705 = vmatpush1.msra.mxu0 0.0
    %706 = vmatprep.subr.mxu0 0.0
    %707 = vmatpush1.msra.mxu0 0.0
    %708 = vmatprep.subr.mxu0 0.0
    %709 = vmatpush1.msra.mxu0 0.0
    %710 = vmatprep.subr.mxu0 0.0
    %711 = vmatpush1.msra.mxu0 0.0
    %712 = vmatprep.subr.mxu0 0.0
    %713 = vmatpush1.msra.mxu0 0.0
    %714 = vmatprep.mubr.f32.mxu0 0.0
    %715 = vmatmul.mubr.f32.gmra.mrb[0].mxu0 %v513
    %v716 = vpop.f32.mrb[0].mxu0
    %v717 = vadd.f32 %v575, %v716
    %v718 = vpop.f32.mrb[0].mxu0
    %719 = vdwg.mxu0
    %720 = vmatprep.subr.mxu0 0.0
    %721 = vmatpush1.xpose.msra.mxu0 %v648
    %722 = vmatprep.subr.mxu0 0.0
    %723 = vmatpush1.xpose.msra.mxu0 0.0
    %724 = vmatprep.subr.mxu0 0.0
    %725 = vmatpush1.xpose.msra.mxu0 0.0
    %726 = vmatprep.subr.mxu0 0.0
    %727 = vmatpush1.xpose.msra.mxu0 0.0
    %728 = vmatprep.subr.mxu0 0.0
    %729 = vmatpush1.xpose.msra.mxu0 0.0
    %730 = vmatprep.subr.mxu0 0.0
    %731 = vmatpush1.xpose.msra.mxu0 0.0
    %732 = vmatprep.subr.mxu0 0.0
    %733 = vmatpush1.xpose.msra.mxu0 0.0
    %734 = vmatprep.subr.mxu0 0.0
    %735 = vmatpush1.xpose.msra.mxu0 0.0
    %736 = vmatprep.subr.mxu0 0.0
    %737 = vmatpush1.xpose.msra.mxu0 0.0
    %738 = vmatprep.subr.mxu0 0.0
    %739 = vmatpush1.xpose.msra.mxu0 0.0
    %740 = vmatprep.subr.mxu0 0.0
    %741 = vmatpush1.xpose.msra.mxu0 0.0
    %742 = vmatprep.subr.mxu0 0.0
    %743 = vmatpush1.xpose.msra.mxu0 0.0
    %744 = vmatprep.subr.mxu0 0.0
    %745 = vmatpush1.xpose.msra.mxu0 0.0
    %746 = vmatprep.subr.mxu0 0.0
    %747 = vmatpush1.xpose.msra.mxu0 0.0
    %748 = vmatprep.subr.mxu0 0.0
    %749 = vmatpush1.xpose.msra.mxu0 0.0
    %750 = vmatprep.subr.mxu0 0.0
    %751 = vmatpush1.xpose.msra.mxu0 0.0
    %752 = vmatprep.subr.mxu0 0.0
    %753 = vmatpush1.xpose.msra.mxu0 0.0
    %754 = vmatprep.subr.mxu0 0.0
    %755 = vmatpush1.xpose.msra.mxu0 0.0
    %756 = vmatprep.subr.mxu0 0.0
    %757 = vmatpush1.xpose.msra.mxu0 0.0
    %758 = vmatprep.subr.mxu0 0.0
    %759 = vmatpush1.xpose.msra.mxu0 0.0
    %760 = vmatprep.subr.mxu0 0.0
    %761 = vmatpush1.xpose.msra.mxu0 0.0
    %762 = vmatprep.subr.mxu0 0.0
    %763 = vmatpush1.xpose.msra.mxu0 0.0
    %764 = vmatprep.subr.mxu0 0.0
    %765 = vmatpush1.xpose.msra.mxu0 0.0
    %766 = vmatprep.subr.mxu0 0.0
    %767 = vmatpush1.xpose.msra.mxu0 0.0
    %768 = vmatprep.subr.mxu0 0.0
    %769 = vmatpush1.xpose.msra.mxu0 0.0
    %770 = vmatprep.subr.mxu0 0.0
    %771 = vmatpush1.xpose.msra.mxu0 0.0
    %772 = vmatprep.subr.mxu0 0.0
    %773 = vmatpush1.xpose.msra.mxu0 0.0
    %774 = vmatprep.subr.mxu0 0.0
    %775 = vmatpush1.xpose.msra.mxu0 0.0
    %776 = vmatprep.subr.mxu0 0.0
    %777 = vmatpush1.xpose.msra.mxu0 0.0
    %778 = vmatprep.subr.mxu0 0.0
    %779 = vmatpush1.xpose.msra.mxu0 0.0
    %780 = vmatprep.subr.mxu0 0.0
    %781 = vmatpush1.xpose.msra.mxu0 0.0
    %782 = vmatprep.subr.mxu0 0.0
    %783 = vmatpush1.xpose.msra.mxu0 0.0
    %784 = vmatprep.mubr.f32.mxu0 0.0
    %785 = vmatmul.mubr.f32.gmra.mrb[0].mxu0 %v646
    %v786 = vpop.f32.mrb[0].mxu0
    %v787 = vadd.f32 0.0, %v786
    %v788 = vpop.f32.mrb[0].mxu0
    %789 = vdwg.mxu0
    %v790 = vmul.f32 %v787, 0.088388346
    %vm791 = vcmask 64512
    %v792 = vsel %vm791, %v790, -inf
    %793 = vmax.xlane.f32.xlu0 %v792
    %v794 = vpop.xlane.xlu0 %793
    %v795 = vsub.f32 %v790, %v794
    %v796 = vmul.f32 %v795, 1.442695
    %v797 = vpow.pop %v796
    %v798 = vsel %vm791, %v797, 0.0
    %799 = vadd.xlane.f32.xlu0 %v798
    %v800 = vpop.xlane.xlu0 %799
    %v801 = vrcp.pop %v800
    %v802 = vmul.f32 %v797, %v801
    %v804 = vsel %vm791, %v802, 0
    %806 = vmatprep.subr.mxu0 0.0
    %807 = vmatpush1.msra.mxu0 %v717
    %808 = vmatprep.subr.mxu0 0.0
    %809 = vmatpush1.msra.mxu0 0.0
    %810 = vmatprep.subr.mxu0 0.0
    %811 = vmatpush1.msra.mxu0 0.0
    %812 = vmatprep.subr.mxu0 0.0
    %813 = vmatpush1.msra.mxu0 0.0
    %814 = vmatprep.subr.mxu0 0.0
    %815 = vmatpush1.msra.mxu0 0.0
    %816 = vmatprep.subr.mxu0 0.0
    %817 = vmatpush1.msra.mxu0 0.0
    %818 = vmatprep.subr.mxu0 0.0
    %819 = vmatpush1.msra.mxu0 0.0
    %820 = vmatprep.subr.mxu0 0.0
    %821 = vmatpush1.msra.mxu0 0.0
    %822 = vmatprep.subr.mxu0 0.0
    %823 = vmatpush1.msra.mxu0 0.0
    %824 = vmatprep.subr.mxu0 0.0
    %825 = vmatpush1.msra.mxu0 0.0
    %826 = vmatprep.subr.mxu0 0.0
    %827 = vmatpush1.msra.mxu0 0.0
    %828 = vmatprep.subr.mxu0 0.0
    %829 = vmatpush1.msra.mxu0 0.0
    %830 = vmatprep.subr.mxu0 0.0
    %831 = vmatpush1.msra.mxu0 0.0
    %832 = vmatprep.subr.mxu0 0.0
    %833 = vmatpush1.msra.mxu0 0.0
    %834 = vmatprep.subr.mxu0 0.0
    %835 = vmatpush1.msra.mxu0 0.0
    %836 = vmatprep.subr.mxu0 0.0
    %837 = vmatpush1.msra.mxu0 0.0
    %838 = vmatprep.subr.mxu0 0.0
    %839 = vmatpush1.msra.mxu0 0.0
    %840 = vmatprep.subr.mxu0 0.0
    %841 = vmatpush1.msra.mxu0 0.0
    %842 = vmatprep.subr.mxu0 0.0
    %843 = vmatpush1.msra.mxu0 0.0
    %844 = vmatprep.subr.mxu0 0.0
    %845 = vmatpush1.msra.mxu0 0.0
    %846 = vmatprep.subr.mxu0 0.0
    %847 = vmatpush1.msra.mxu0 0.0
    %848 = vmatprep.subr.mxu0 0.0
    %849 = vmatpush1.msra.mxu0 0.0
    %850 = vmatprep.subr.mxu0 0.0
    %851 = vmatpush1.msra.mxu0 0.0
    %852 = vmatprep.subr.mxu0 0.0
    %853 = vmatpush1.msra.mxu0 0.0
    %854 = vmatprep.subr.mxu0 0.0
    %855 = vmatpush1.msra.mxu0 0.0
    %856 = vmatprep.subr.mxu0 0.0
    %857 = vmatpush1.msra.mxu0 0.0
    %858 = vmatprep.subr.mxu0 0.0
    %859 = vmatpush1.msra.mxu0 0.0
    %860 = vmatprep.subr.mxu0 0.0
    %861 = vmatpush1.msra.mxu0 0.0
    %862 = vmatprep.subr.mxu0 0.0
    %863 = vmatpush1.msra.mxu0 0.0
    %864 = vmatprep.subr.mxu0 0.0
    %865 = vmatpush1.msra.mxu0 0.0
    %866 = vmatprep.subr.mxu0 0.0
    %867 = vmatpush1.msra.mxu0 0.0
    %868 = vmatprep.subr.mxu0 0.0
    %869 = vmatpush1.msra.mxu0 0.0
    %870 = vmatprep.mubr.f32.mxu0 0.0
    %871 = vmatmul.mubr.f32.gmra.mrb[0].mxu0 %v804
    %v872 = vpop.f32.mrb[0].mxu0
    %v873 = vadd.f32 0.0, %v872
    %v874 = vpop.f32.mrb[0].mxu0
    %875 = vdwg.mxu0
    %v876 = vld [vmem:[#allocation13] sm:$0xff]
    %v877 = vld [vmem:[#allocation13 + $0x8] sm:$0xff]
    %v878 = vld [vmem:[#allocation13 + $0x10] sm:$0xff]
    %v879 = vld [vmem:[#allocation13 + $0x18] sm:$0xff]
    %v880 = vld [vmem:[#allocation13 + $0x20] sm:$0xff]
    %v881 = vld [vmem:[#allocation13 + $0x28] sm:$0xff]
    %v882 = vld [vmem:[#allocation13 + $0x30] sm:$0xff]
    %v883 = vld [vmem:[#allocation13 + $0x38] sm:$0xff]
    %v884 = vld [vmem:[#allocation13 + $0x40] sm:$0xff]
    %v885 = vld [vmem:[#allocation13 + $0x48] sm:$0xff]
    %v886 = vld [vmem:[#allocation13 + $0x50] sm:$0xff]
    %v887 = vld [vmem:[#allocation13 + $0x58] sm:$0xff]
    %v888 = vld [vmem:[#allocation13 + $0x60] sm:$0xff]
    %v889 = vld [vmem:[#allocation13 + $0x68] sm:$0xff]
    %v890 = vld [vmem:[#allocation13 + $0x70] sm:$0xff]
    %v891 = vld [vmem:[#allocation13 + $0x78] sm:$0xff]
    %v892 = vld [vmem:[%s12] sm:$0x1]
    %v894 = vlaneseq
    %v895 = vshrl.u32 %v894, 7
    %v896 = vsub.s32 0, %v895
    %v897 = vrot.slane %v892, %v896
    %899 = vmatprep.subr.mxu0 0.0
    %900 = vmatpush1.msra.mxu0 %v876
    %901 = vmatprep.subr.mxu0 0.0
    %902 = vmatpush1.msra.mxu0 %v877
    %903 = vmatprep.subr.mxu0 0.0
    %904 = vmatpush1.msra.mxu0 %v878
    %905 = vmatprep.subr.mxu0 0.0
    %906 = vmatpush1.msra.mxu0 %v879
    %907 = vmatprep.subr.mxu0 0.0
    %908 = vmatpush1.msra.mxu0 %v880
    %909 = vmatprep.subr.mxu0 0.0
    %910 = vmatpush1.msra.mxu0 %v881
    %911 = vmatprep.subr.mxu0 0.0
    %912 = vmatpush1.msra.mxu0 %v882
    %913 = vmatprep.subr.mxu0 0.0
    %914 = vmatpush1.msra.mxu0 %v883
    %915 = vmatprep.subr.mxu0 0.0
    %916 = vmatpush1.msra.mxu0 %v884
    %917 = vmatprep.subr.mxu0 0.0
    %918 = vmatpush1.msra.mxu0 %v885
    %919 = vmatprep.subr.mxu0 0.0
    %920 = vmatpush1.msra.mxu0 %v886
    %921 = vmatprep.subr.mxu0 0.0
    %922 = vmatpush1.msra.mxu0 %v887
    %923 = vmatprep.subr.mxu0 0.0
    %924 = vmatpush1.msra.mxu0 %v888
    %925 = vmatprep.subr.mxu0 0.0
    %926 = vmatpush1.msra.mxu0 %v889
    %927 = vmatprep.subr.mxu0 0.0
    %928 = vmatpush1.msra.mxu0 %v890
    %929 = vmatprep.subr.mxu0 0.0
    %930 = vmatpush1.msra.mxu0 %v891
    %931 = vmatprep.subr.mxu0 0.0
    %932 = vmatpush1.msra.mxu0 0.0
    %933 = vmatprep.subr.mxu0 0.0
    %934 = vmatpush1.msra.mxu0 0.0
    %935 = vmatprep.subr.mxu0 0.0
    %936 = vmatpush1.msra.mxu0 0.0
    %937 = vmatprep.subr.mxu0 0.0
    %938 = vmatpush1.msra.mxu0 0.0
    %939 = vmatprep.subr.mxu0 0.0
    %940 = vmatpush1.msra.mxu0 0.0
    %941 = vmatprep.subr.mxu0 0.0
    %942 = vmatpush1.msra.mxu0 0.0
    %943 = vmatprep.subr.mxu0 0.0
    %944 = vmatpush1.msra.mxu0 0.0
    %945 = vmatprep.subr.mxu0 0.0
    %946 = vmatpush1.msra.mxu0 0.0
    %947 = vmatprep.subr.mxu0 0.0
    %948 = vmatpush1.msra.mxu0 0.0
    %949 = vmatprep.subr.mxu0 0.0
    %950 = vmatpush1.msra.mxu0 0.0
    %951 = vmatprep.subr.mxu0 0.0
    %952 = vmatpush1.msra.mxu0 0.0
    %953 = vmatprep.subr.mxu0 0.0
    %954 = vmatpush1.msra.mxu0 0.0
    %955 = vmatprep.subr.mxu0 0.0
    %956 = vmatpush1.msra.mxu0 0.0
    %957 = vmatprep.subr.mxu0 0.0
    %958 = vmatpush1.msra.mxu0 0.0
    %959 = vmatprep.subr.mxu0 0.0
    %960 = vmatpush1.msra.mxu0 0.0
    %961 = vmatprep.subr.mxu0 0.0
    %962 = vmatpush1.msra.mxu0 0.0
    %963 = vmatprep.mubr.f32.mxu0 0.0
    %964 = vmatmul.mubr.f32.gmra.mrb[0].mxu0 %v873
    %v965 = vpop.f32.mrb[0].mxu0
    %v966 = vadd.f32 %v897, %v965
    %v967 = vpop.f32.mrb[0].mxu0
    %968 = vdwg.mxu0
    %969 = vmax.xlane.f32.xlu0 %v966
    %v970 = vpop.xlane.xlu0 %969
    %v971 = vsub.f32 %v966, %v970
    %v972 = vmul.f32 %v971, 1.442695
    %v973 = vpow.pop %v972
    %974 = vadd.xlane.f32.xlu0 %v973
    %v975 = vpop.xlane.xlu0 %974
    %v976 = vrcp.pop %v975
    %v977 = vmul.f32 %v973, %v976
    %978 = vst [vmem:[#allocation14] sm:$0xff] %v977
    // Predicated region
    $region82: #{tpu_custom_call.1} parent=1 // pred_check
      _
    $region83: #{tpu_custom_call.1} parent=1 // pred_check_branch
      %980 = sbr.rel (0) target = $region85
    $region84: #{tpu_custom_call.1} parent=1 // pred_region
      %s982 = ssub.s32 128, 128
      %983 = vsyncadd [#allocation4], %s982
      %s985 = sshll.u32 [#allocation14], 4
      %s986 = int_to_ptr.vmem [resolvable:$true] %s985
      %988 = dma.vmem_to_hbm [thread:$0]  %s986, 128, %s13, [#allocation4]
    $region85: #{tpu_custom_call.1} parent=1 // pred_fallthru
      _
    // Predicated region
    $region86: #{tpu_custom_call.1} parent=1 // pred_check
      _
    $region87: #{tpu_custom_call.1} parent=1 // pred_check_branch
      %990 = sbr.rel (0) target = $region89
    $region88: #{tpu_custom_call.1} parent=1 // pred_region
      %991 = dma.done [#allocation4], 128
    $region89: #{tpu_custom_call.1} parent=1 // pred_fallthru
      _
    %992 = vsyncpa [#allocation3], 1
    %993 = vsyncpa [#allocation6], 1
    %994 = vsyncpa [#allocation9], 1
    %995 = vsyncpa [#allocation12], 1
    %996 = vsyncpa [#allocation4], 1

</llo_original>
